<compile_context>
chip_gen: v7x
topology: tpu7x:2x2x1
jax: 0.10.0
libtpu: 0.0.40
codegen_flags: <defaults>
</compile_context>

<pallas_src>
import numpy as np
import jax
import jax.numpy as jnp
from jax.experimental import pallas as pl
from jax.experimental.pallas import tpu as pltpu


# ----------------------------- Pallas kernel -----------------------------

def _matmul_bias_kernel(x_ref, w_ref, b_ref, o_ref):
    # x tile: (tile_m, C_in) streamed; w: (C_in, N) resident bf16; b: (1, N) resident f32.
    # bf16 operands feed the MXU single-pass; accumulate in f32.
    x = x_ref[...].astype(jnp.bfloat16)
    w = w_ref[...]
    y = jnp.dot(x, w, preferred_element_type=jnp.float32)
    y = y + b_ref[...].astype(jnp.float32)
    o_ref[...] = y.astype(o_ref.dtype)


def _pick_tile_m(M, min_steps=4):
    # Largest row tile (cap 1024) that still yields >= min_steps grid steps; the cdiv grid
    # masks a partial tail block automatically. >= 4 steps keeps v7x's 2 TensorCores each
    # double-buffered; big tiles amortize the ~0.35 us/step overhead on v5e/v6e.
    for t in (1024, 512, 256, 128, 64, 32, 16, 8):
        if pl.cdiv(M, t) >= min_steps:
            return t
    return 8


def _vmem_limit_bytes(tile_m, K, N, x_bytes, o_bytes):
    work = (2 * tile_m * K * x_bytes      # double-buffered streaming x tiles
            + 2 * K * N * 2               # bf16 weight (worst case 2 buffers)
            + 2 * N * 4                   # bias
            + 2 * tile_m * N * o_bytes)   # double-buffered output tiles
    # 2x headroom for compiler-internal scratch; floor 16 MiB, cap below v7x's 64 MiB physical.
    return int(min(max(2 * work + (4 << 20), 16 << 20), 56 << 20))


def matmul_bias_pallas(x2d, w2d, b2d, out_dtype=None):
    M, K = x2d.shape
    K2, N = w2d.shape
    assert K == K2 and b2d.shape == (1, N)
    out_dtype = x2d.dtype if out_dtype is None else jnp.dtype(out_dtype)

    w2d = w2d.astype(jnp.bfloat16)        # halve weight DMA bytes + VMEM footprint
    b2d = b2d.astype(jnp.float32)

    tile_m = _pick_tile_m(M)
    grid = (pl.cdiv(M, tile_m),)
    x_bytes = x2d.dtype.itemsize
    o_bytes = jnp.dtype(out_dtype).itemsize

    cost = pl.CostEstimate(
        flops=2 * M * K * N,
        transcendentals=0,
        bytes_accessed=M * K * x_bytes + K * N * 2 + N * 4 + M * N * o_bytes)

    def build(resident_mode):
        extra = {} if resident_mode is None else {"pipeline_mode": resident_mode}
        return pl.pallas_call(
            _matmul_bias_kernel,
            out_shape=jax.ShapeDtypeStruct((M, N), out_dtype),
            grid_spec=pltpu.PrefetchScalarGridSpec(
                num_scalar_prefetch=0,
                grid=grid,
                in_specs=[pl.BlockSpec((tile_m, K), lambda i: (i, 0)),        # streaming token rows
                          pl.BlockSpec((K, N), lambda i: (0, 0), **extra),    # resident weight
                          pl.BlockSpec((1, N), lambda i: (0, 0), **extra)],   # resident bias
                out_specs=pl.BlockSpec((tile_m, N), lambda i: (i, 0))),
            compiler_params=pltpu.CompilerParams(
                dimension_semantics=("parallel",),
                vmem_limit_bytes=_vmem_limit_bytes(tile_m, K, N, x_bytes, o_bytes)),
            cost_estimate=cost,
        )

    try:
        # Grid-invariant weight/bias: request single buffering to free VMEM for bigger row tiles.
        return build(pl.Buffered(1))(x2d, w2d, b2d)
    except Exception:
        # TODO(synk): fallback for JAX versions where pipeline_mode=pl.Buffered(1) is rejected
        # at the top-level grid; the resident blocks then just get default double-buffering.
        return build(None)(x2d, w2d, b2d)


# ----------------------------- module forward -----------------------------

def final_patch_expanding_forward(x, weight, bias, patch_size, out_dtype=None):
    """Matches `final_patch_expanding.forward`.

    x:      (B, D, H, W, C)                  -- channels-last input (module permutes internally)
    weight: (C_in, num_class, p0, p1, p2)    -- PyTorch ConvTranspose3d weight layout
    bias:   (num_class,)
    returns (B, num_class, D*p0, H*p1, W*p2)
    """
    B, D, H, W, C = x.shape
    p0, p1, p2 = patch_size
    num_class = weight.shape[1]
    P = p0 * p1 * p2
    N = P * num_class
    M = B * D * H * W

    # (C_in, nc, p0, p1, p2) -> (C_in, p0, p1, p2, nc) -> (C_in, N)   (co minor in N)
    w2d = jnp.transpose(weight, (0, 2, 3, 4, 1)).reshape(C, N)
    # bias broadcast over kernel positions, co minor -> matches w2d's N ordering
    b2d = jnp.broadcast_to(bias.reshape(1, num_class), (P, num_class)).reshape(1, N)

    y2d = matmul_bias_pallas(x.reshape(M, C), w2d, b2d, out_dtype=out_dtype)  # (M, N)

    # Pure layout: scatter each token's (p0, p1, p2, nc) patch into the dense 5-D output (XLA).
    y = y2d.reshape(B, D, H, W, p0, p1, p2, num_class)
    y = jnp.transpose(y, (0, 7, 1, 4, 2, 5, 3, 6))
    return y.reshape(B, num_class, D * p0, H * p1, W * p2)


# ----------------------------- main -----------------------------

if __name__ == "__main__":
    B, D, H, W = 2, 4, 4, 4
    dim, num_class = 16, 2
    patch_size = (4, 4, 4)            # to_3tuple(4)

    key = jax.random.PRNGKey(0)
    k_x, k_w, k_b = jax.random.split(key, 3)
    x = jax.random.normal(k_x, (B, D, H, W, dim), dtype=jnp.float32)
    weight = 0.05 * jax.random.normal(k_w, (dim, num_class) + patch_size, dtype=jnp.float32)
    bias = 0.02 * jax.random.normal(k_b, (num_class,), dtype=jnp.float32)

    y = final_patch_expanding_forward(x, weight, bias, patch_size)
    y = jax.block_until_ready(y)

    # Independent reference built directly from the ConvTranspose3d (kernel==stride) definition:
    # each kernel offset (kd, kh, kw) writes a strided slice of the output.
    p0, p1, p2 = patch_size
    y_ref = jnp.zeros((B, num_class, D * p0, H * p1, W * p2), dtype=jnp.float32)
    for kd in range(p0):
        for kh in range(p1):
            for kw in range(p2):
                contrib = jnp.einsum("bdhwc,cn->bndhw", x, weight[:, :, kd, kh, kw])
                contrib = contrib + bias[None, :, None, None, None]
                y_ref = y_ref.at[:, :, kd::p0, kh::p1, kw::p2].set(contrib)

    assert y.shape == (B, num_class, D * p0, H * p1, W * p2) and y.dtype == jnp.float32
    assert bool(jnp.all(jnp.isfinite(y)))
    # bf16 MXU operands -> loosened tolerance vs. the f32 reference (per review guidance).
    np.testing.assert_allclose(np.asarray(y), np.asarray(y_ref), rtol=2e-2, atol=2e-2)
    print("KERNEL_OK")
</pallas_src>

<mosaic_0001>
module attributes {stable_mosaic.version = 11 : i64} {
  func.func @_matmul_bias_kernel(%arg0: i32, %arg1: memref<32x16xf32, #tpu.memory_space<vmem>>, %arg2: memref<16x128xbf16, #tpu.memory_space<vmem>>, %arg3: memref<1x128xf32, #tpu.memory_space<vmem>>, %arg4: memref<32x128xf32, #tpu.memory_space<vmem>>) attributes {dimension_semantics = [#tpu.dimension_semantics<parallel>], iteration_bounds = array<i64: 4>, scalar_prefetch = 0 : i64, scratch_operands = 0 : i64, tpu.core_type = #tpu.core_type<tc>, window_params = [{transform_indices = @transform_0, window_bounds = array<i64: 32, 16>}, {pipeline_mode = #tpu.pipeline_mode<synchronous>, transform_indices = @transform_1, window_bounds = array<i64: 16, 128>}, {pipeline_mode = #tpu.pipeline_mode<synchronous>, transform_indices = @transform_2, window_bounds = array<i64: 1, 128>}, {transform_indices = @transform_3, window_bounds = array<i64: 32, 128>}]} {
    %c0 = arith.constant 0 : index
    %c0_0 = arith.constant 0 : index
    %0 = vector.load %arg1[%c0, %c0_0] : memref<32x16xf32, #tpu.memory_space<vmem>>, vector<32x16xf32>
    %1 = arith.truncf %0 : vector<32x16xf32> to vector<32x16xbf16>
    %c0_1 = arith.constant 0 : index
    %c0_2 = arith.constant 0 : index
    %2 = vector.load %arg2[%c0_1, %c0_2] : memref<16x128xbf16, #tpu.memory_space<vmem>>, vector<16x128xbf16>
    %cst = arith.constant dense<0.000000e+00> : vector<32x128xf32>
    %3 = tpu.matmul %1, %2, %cst {dimension_numbers = #tpu.dot_dimension_numbers<[1], [0], [0], [1], [0, 0, 1, 1], [], []>} : vector<32x16xbf16>, vector<16x128xbf16>, vector<32x128xf32> -> vector<32x128xf32>
    %c0_3 = arith.constant 0 : index
    %c0_4 = arith.constant 0 : index
    %4 = vector.load %arg3[%c0_3, %c0_4] : memref<1x128xf32, #tpu.memory_space<vmem>>, vector<1x128xf32>
    %5 = vector.broadcast %4 : vector<1x128xf32> to vector<32x128xf32>
    %6 = arith.addf %3, %5 : vector<32x128xf32>
    %c0_5 = arith.constant 0 : index
    %c0_6 = arith.constant 0 : index
    %7 = vector.load %arg4[%c0_5, %c0_6] : memref<32x128xf32, #tpu.memory_space<vmem>>, vector<32x128xf32>
    tpu.vector_store %arg4[%c0_5, %c0_6], %6 {strides = array<i32>} : memref<32x128xf32, #tpu.memory_space<vmem>>, vector<32x128xf32>,
    return
  }
  func.func @transform_0(%arg0: i32) -> (i32, i32) {
    %c0_i32 = arith.constant 0 : i32
    %c0_i32_0 = arith.constant 0 : i32
    return %arg0, %c0_i32 : i32, i32
  }
  func.func @transform_1(%arg0: i32) -> (i32, i32) {
    %c0_i32 = arith.constant 0 : i32
    %c0_i32_0 = arith.constant 0 : i32
    %c0_i32_1 = arith.constant 0 : i32
    return %c0_i32, %c0_i32_0 : i32, i32
  }
  func.func @transform_2(%arg0: i32) -> (i32, i32) {
    %c0_i32 = arith.constant 0 : i32
    %c0_i32_0 = arith.constant 0 : i32
    %c0_i32_1 = arith.constant 0 : i32
    return %c0_i32, %c0_i32_0 : i32, i32
  }
  func.func @transform_3(%arg0: i32) -> (i32, i32) {
    %c0_i32 = arith.constant 0 : i32
    %c0_i32_0 = arith.constant 0 : i32
    return %arg0, %c0_i32 : i32, i32
  }
}

module attributes {stable_mosaic.version = 11 : i64} {
  func.func @_matmul_bias_kernel(%arg0: i32, %arg1: memref<32x16xf32, #tpu.memory_space<vmem>>, %arg2: memref<16x128xbf16, #tpu.memory_space<vmem>>, %arg3: memref<1x128xf32, #tpu.memory_space<vmem>>, %arg4: memref<32x128xf32, #tpu.memory_space<vmem>>) attributes {dimension_semantics = [#tpu.dimension_semantics<parallel>], iteration_bounds = array<i64: 4>, scalar_prefetch = 0 : i64, scratch_operands = 0 : i64, tpu.core_type = #tpu.core_type<tc>, window_params = [{transform_indices = @transform_0, window_bounds = array<i64: 32, 16>}, {pipeline_mode = #tpu.pipeline_mode<synchronous>, transform_indices = @transform_1, window_bounds = array<i64: 16, 128>}, {pipeline_mode = #tpu.pipeline_mode<synchronous>, transform_indices = @transform_2, window_bounds = array<i64: 1, 128>}, {transform_indices = @transform_3, window_bounds = array<i64: 32, 128>}]} {
    %c0 = arith.constant 0 : index
    %c0_0 = arith.constant 0 : index
    %0 = vector.load %arg1[%c0, %c0_0] : memref<32x16xf32, #tpu.memory_space<vmem>>, vector<32x16xf32>
    %1 = arith.truncf %0 : vector<32x16xf32> to vector<32x16xbf16>
    %c0_1 = arith.constant 0 : index
    %c0_2 = arith.constant 0 : index
    %2 = vector.load %arg2[%c0_1, %c0_2] : memref<16x128xbf16, #tpu.memory_space<vmem>>, vector<16x128xbf16>
    %cst = arith.constant dense<0.000000e+00> : vector<32x128xf32>
    %3 = tpu.matmul %1, %2, %cst {dimension_numbers = #tpu.dot_dimension_numbers<[1], [0], [0], [1], [0, 0, 1, 1], [], []>} : vector<32x16xbf16>, vector<16x128xbf16>, vector<32x128xf32> -> vector<32x128xf32>
    %c0_3 = arith.constant 0 : index
    %c0_4 = arith.constant 0 : index
    %4 = vector.load %arg3[%c0_3, %c0_4] : memref<1x128xf32, #tpu.memory_space<vmem>>, vector<1x128xf32>
    %5 = vector.broadcast %4 : vector<1x128xf32> to vector<32x128xf32>
    %6 = arith.addf %3, %5 : vector<32x128xf32>
    %c0_5 = arith.constant 0 : index
    %c0_6 = arith.constant 0 : index
    %7 = vector.load %arg4[%c0_5, %c0_6] : memref<32x128xf32, #tpu.memory_space<vmem>>, vector<32x128xf32>
    tpu.vector_store %arg4[%c0_5, %c0_6], %6 {strides = array<i32>} : memref<32x128xf32, #tpu.memory_space<vmem>>, vector<32x128xf32>,
    return
  }
  func.func @transform_0(%arg0: i32) -> (i32, i32) {
    %c0_i32 = arith.constant 0 : i32
    %c0_i32_0 = arith.constant 0 : i32
    return %arg0, %c0_i32 : i32, i32
  }
  func.func @transform_1(%arg0: i32) -> (i32, i32) {
    %c0_i32 = arith.constant 0 : i32
    %c0_i32_0 = arith.constant 0 : i32
    %c0_i32_1 = arith.constant 0 : i32
    return %c0_i32, %c0_i32_0 : i32, i32
  }
  func.func @transform_2(%arg0: i32) -> (i32, i32) {
    %c0_i32 = arith.constant 0 : i32
    %c0_i32_0 = arith.constant 0 : i32
    %c0_i32_1 = arith.constant 0 : i32
    return %c0_i32, %c0_i32_0 : i32, i32
  }
  func.func @transform_3(%arg0: i32) -> (i32, i32) {
    %c0_i32 = arith.constant 0 : i32
    %c0_i32_0 = arith.constant 0 : i32
    return %arg0, %c0_i32 : i32, i32
  }
}

</mosaic_0001>

<llo_original>
// kernel: tpu_custom_call.1
$region0: #{tpu_custom_call.1}
  #allocation0 [shape = 'u32[]', space=smem, size = 0x4, offset = 0x4, fixed_abs, tag = 'smem constant byte address 0x4 - core index']
  #allocation1 [shape = 'u32[144,128]{1,0:T(1,128)}', space=vmem, size = 0x12000, scoped, tag = 'internal scratch']
  %s0 = inlined_call_operand.vmem [shape: f32[128,16], index: 0, kind: input, shape index: {}]
  %s1 = inlined_call_operand.vmem [shape: bf16[16,128], index: 1, kind: input, shape index: {}]
  %s2 = inlined_call_operand.vmem [shape: f32[1,128], index: 2, kind: input, shape index: {}]
  %s3 = inlined_call_operand.hbm [shape: f32[128,128], index: 3, kind: output, shape index: {}]
  %s4 = sld [smem:[#allocation0]]
  $region45: #{tpu_custom_call.1} parent=0
    _
  %s6 = ssub.s32 1, %s4
  %s7 = scalar_select 0, %s6, %s4
  $region1: #{tpu_custom_call.1} parent=0
    #allocation2 [shape = 'u8[32768]{0}', space=vmem, size = 0x8000, scoped, tag = 'output window, operand 0']
    #allocation3 [shape = 's32[2]{0}', space=sflag, size = 0x8, scoped, tag = 'scoped memory for tpu_custom_call.1']
    %8 = vsyncpa [#allocation3], 0
    %s9 = scalar_lea.sflag [#allocation3], 1
    %10 = vsyncpa %s9, 0
    loop: start=0, step=1, limit=6
    $region2: #{tpu_custom_call.1} parent=1 // loop_pre_header
      _
    $region3: #{tpu_custom_call.1} parent=1 // loop_header
      %s12 = sphi 0, %s16
      %p13 = scmp.ge.s32.totalorder %s12, 6
      %s22 = sphi 0, %s24
      %s25 = sphi 0, %s22
      %s26 = sphi 0, %s25
      %s42 = sphi 0, %s26
      %s46 = sphi 0, %s46
      %s48 = sphi 0, %s46
      %s49 = sphi 0, %s48
      %s63 = sphi 0, %s49
      %s67 = sphi 0, %s67
      %s69 = sphi 0, %s67
      %s70 = sphi 0, %s69
      %s84 = sphi 0, %s70
      %s90 = sphi 0, %s92
      %s93 = sphi 0, %s90
      %s94 = sphi 0, %s93
      %s110 = sphi 0, %s94
    $region4: #{tpu_custom_call.1} parent=1 // loop_header_branch
      %15 = sbr.rel (%p13) target = $region8
    $region5: #{tpu_custom_call.1} parent=1 // loop_body
      %s17 = ssub.s32 %s12, 1
      %s18 = ssub.s32 %s12, 2
      %s19 = sadd.s32 %s12, 1
      %s20 = ssub.s32 %s12, %s19
      %p21 = scmp.eq.s32.totalorder %s20, 0
      %s23 = sadd.s32 %s22, 1
      %s24 = scalar_select %p21, %s22, %s23
      %p27 = pneg %p21
      %p28 = scmp.eq.s32.totalorder %s12, 3
      %p29 = por %p27, %p28
      %p30 = scmp.ne.s32.totalorder %s22, %s25
      %p31 = scmp.eq.s32.totalorder %s12, 0
      %p32 = por %p30, %p31
      %p33 = scmp.ne.s32.totalorder %s22, %s25
      %p34 = scmp.eq.s32.totalorder %s17, 3
      %p35 = por %p33, %p34
      %p36 = scmp.ne.s32.totalorder %s25, %s26
      %p37 = scmp.eq.s32.totalorder %s17, 0
      %p38 = por %p36, %p37
      %p39 = scmp.ne.s32.totalorder %s25, %s26
      %p40 = scmp.eq.s32.totalorder %s18, 3
      %p41 = por %p39, %p40
      %p43 = scmp.ne.s32.totalorder %s26, %s42
      %p44 = scmp.eq.s32.totalorder %s18, 0
      %p45 = por %p43, %p44
      %s47 = sadd.s32 %s46, 1
      %p50 = scmp.eq.s32.totalorder %s12, 3
      %p51 = scmp.ne.s32.totalorder %s46, %s48
      %p52 = scmp.eq.s32.totalorder %s12, 0
      %p53 = por %p51, %p52
      %p54 = scmp.ne.s32.totalorder %s46, %s48
      %p55 = scmp.eq.s32.totalorder %s17, 3
      %p56 = por %p54, %p55
      %p57 = scmp.ne.s32.totalorder %s48, %s49
      %p58 = scmp.eq.s32.totalorder %s17, 0
      %p59 = por %p57, %p58
      %p60 = scmp.ne.s32.totalorder %s48, %s49
      %p61 = scmp.eq.s32.totalorder %s18, 3
      %p62 = por %p60, %p61
      %p64 = scmp.ne.s32.totalorder %s49, %s63
      %p65 = scmp.eq.s32.totalorder %s18, 0
      %p66 = por %p64, %p65
      %s68 = sadd.s32 %s67, 1
      %p71 = scmp.eq.s32.totalorder %s12, 3
      %p72 = scmp.ne.s32.totalorder %s67, %s69
      %p73 = scmp.eq.s32.totalorder %s12, 0
      %p74 = por %p72, %p73
      %p75 = scmp.ne.s32.totalorder %s67, %s69
      %p76 = scmp.eq.s32.totalorder %s17, 3
      %p77 = por %p75, %p76
      %p78 = scmp.ne.s32.totalorder %s69, %s70
      %p79 = scmp.eq.s32.totalorder %s17, 0
      %p80 = por %p78, %p79
      %p81 = scmp.ne.s32.totalorder %s69, %s70
      %p82 = scmp.eq.s32.totalorder %s18, 3
      %p83 = por %p81, %p82
      %p85 = scmp.ne.s32.totalorder %s70, %s84
      %p86 = scmp.eq.s32.totalorder %s18, 0
      %p87 = por %p85, %p86
      %s88 = ssub.s32 %s12, %s19
      %p89 = scmp.eq.s32.totalorder %s88, 0
      %s91 = sadd.s32 %s90, 1
      %s92 = scalar_select %p89, %s90, %s91
      %p95 = pneg %p89
      %p96 = scmp.eq.s32.totalorder %s12, 3
      %p97 = por %p95, %p96
      %p98 = scmp.ne.s32.totalorder %s90, %s93
      %p99 = scmp.eq.s32.totalorder %s12, 0
      %p100 = por %p98, %p99
      %p101 = scmp.ne.s32.totalorder %s90, %s93
      %p102 = scmp.eq.s32.totalorder %s17, 3
      %p103 = por %p101, %p102
      %p104 = scmp.ne.s32.totalorder %s93, %s94
      %p105 = scmp.eq.s32.totalorder %s17, 0
      %p106 = por %p104, %p105
      %p107 = scmp.ne.s32.totalorder %s93, %s94
      %p108 = scmp.eq.s32.totalorder %s18, 3
      %p109 = por %p107, %p108
      %p111 = scmp.ne.s32.totalorder %s94, %s110
      %p112 = scmp.eq.s32.totalorder %s18, 0
      %p113 = por %p111, %p112
      %p114 = scmp.le.s32.totalorder 1, %s12
      %p115 = scmp.lt.s32.totalorder %s12, 5
      %p116 = pnand %p114, %p115
      %p117 = pneg %p116
      // Predicated region
      $region9: #{tpu_custom_call.1} parent=5 // pred_check
        _
      $region10: #{tpu_custom_call.1} parent=5 // pred_check_branch
        %119 = sbr.rel (%p116) target = $region12
      $region11: #{tpu_custom_call.1} parent=5 // pred_region
        %s120 = ssub.s32 %s12, 1
        // Predicated region
        $region13: #{tpu_custom_call.1} parent=11 // pred_check
          %p121 = pneg %p59
        $region14: #{tpu_custom_call.1} parent=11 // pred_check_branch
          %123 = sbr.rel (%p121) target = $region16
        $region15: #{tpu_custom_call.1} parent=11 // pred_region
          _
        $region16: #{tpu_custom_call.1} parent=11 // pred_fallthru
          _
        // Predicated region
        $region17: #{tpu_custom_call.1} parent=11 // pred_check
          %p124 = pneg %p80
        $region18: #{tpu_custom_call.1} parent=11 // pred_check_branch
          %126 = sbr.rel (%p124) target = $region20
        $region19: #{tpu_custom_call.1} parent=11 // pred_region
          _
        $region20: #{tpu_custom_call.1} parent=11 // pred_fallthru
          _
      $region12: #{tpu_custom_call.1} parent=5 // pred_fallthru
        _
      %p127 = scmp.lt.s32.totalorder %s12, 4
      // Predicated region
      $region21: #{tpu_custom_call.1} parent=5 // pred_check
        %p128 = pneg %p127
      $region22: #{tpu_custom_call.1} parent=5 // pred_check_branch
        %130 = sbr.rel (%p128) target = $region24
      $region23: #{tpu_custom_call.1} parent=5 // pred_region
        // Predicated region
        $region25: #{tpu_custom_call.1} parent=23 // pred_check
          %p131 = pneg %p32
        $region26: #{tpu_custom_call.1} parent=23 // pred_check_branch
          %133 = sbr.rel (%p131) target = $region28
        $region27: #{tpu_custom_call.1} parent=23 // pred_region
          %s134 = smul.u32 4, %s12
          %p135 = scmp.lt.s32.totalorder %s134, 15
          %s136 = scalar_select %p135, %s134, 15
          %s137 = smul.addr %s136, 8
          %s138 = scalar_lea.vmem %s0, %s137
          %s139 = smul.u32 4, %s12
        $region28: #{tpu_custom_call.1} parent=23 // pred_fallthru
          _
      $region24: #{tpu_custom_call.1} parent=5 // pred_fallthru
        _
      %p140 = scmp.le.s32.totalorder 1, %s12
      %p141 = scmp.lt.s32.totalorder %s12, 5
      %p142 = pnand %p140, %p141
      %p143 = pneg %p142
      // Predicated region
      $region29: #{tpu_custom_call.1} parent=5 // pred_check
        _
      $region30: #{tpu_custom_call.1} parent=5 // pred_check_branch
        %145 = sbr.rel (%p142) target = $region32
      $region31: #{tpu_custom_call.1} parent=5 // pred_region
        %s146 = ssub.s32 %s12, 1
        %s147 = smul.u32 4, %s17
        %p148 = scmp.lt.s32.totalorder %s147, 15
        %s149 = scalar_select %p148, %s147, 15
        %s150 = smul.addr %s149, 8
        %s151 = scalar_lea.vmem %s0, %s150
        %p152 = pneg %p38
        %p153 = pneg %p35
        %p154 = pneg %p59
        %p155 = pneg %p56
        %p156 = pneg %p80
        %p157 = pneg %p77
        %p158 = pneg %p106
        %p159 = pneg %p103
        %s160 = sand.u32 %s93, 1
        %s161 = scalar_lea.sflag [#allocation3], %s160
        %s162 = sand.u32 %s93, 1
        %s163 = smul.addr %s162, 32
        %s164 = scalar_lea.vmem [#allocation2], %s163
        %s165 = smul.u32 4, %s17
        %p166 = scmp.lt.s32.totalorder %s165, 15
        %s167 = scalar_select %p166, %s165, 15
        %s168 = smul.addr %s167, 8
        %s169 = scalar_lea.vmem %s0, %s168
        %s170 = smul.u32 4, %s17
        %s171 = smul.u32 4, %s17
        %v173 = vld [vmem:[%s169] sm:$0xff]
        %v174 = vld [vmem:[%s169 + $0x8] sm:$0xff]
        %v175 = vld [vmem:[%s169 + $0x10] sm:$0xff]
        %v176 = vld [vmem:[%s169 + $0x18] sm:$0xff]
        %v177 = vpack.c.bf16 %v174, %v173
        %v178 = vpack.c.bf16 %v176, %v175
        %v179 = vld [vmem:[%s1] sm:$0xf]
        %v180 = vld [vmem:[%s1 + $0x4] sm:$0xf]
        %v181 = vld [vmem:[%s2] sm:$0x1]
        %v183 = vlaneseq
        %v184 = vshrl.u32 %v183, 7
        %v185 = vsub.s32 0, %v184
        %v186 = vrot.slane %v181, %v185
        %v190 = vunpack.c.l.b16 %v179
        %v191 = vunpack.c.l.b16 %v180
        %v192 = vpack.c.b16 %v191, %v190
        %vm194 = vcmask 130048
        %v196 = vsel %vm194, %v177, 0
        %v199 = vsel %vm194, %v178, 0
        %201 = vmatprep.subr.bf16.mxu0 0
        %202 = vmatpush1.bf16.msra.mxu0 %v192
        %203 = vmatprep.subr.bf16.mxu0 0
        %204 = vmatpush1.bf16.msra.mxu0 0
        %205 = vmatprep.subr.bf16.mxu0 0
        %206 = vmatpush1.bf16.msra.mxu0 0
        %207 = vmatprep.subr.bf16.mxu0 0
        %208 = vmatpush1.bf16.msra.mxu0 0
        %209 = vmatprep.subr.bf16.mxu0 0
        %210 = vmatpush1.bf16.msra.mxu0 0
        %211 = vmatprep.subr.bf16.mxu0 0
        %212 = vmatpush1.bf16.msra.mxu0 0
        %213 = vmatprep.subr.bf16.mxu0 0
        %214 = vmatpush1.bf16.msra.mxu0 0
        %215 = vmatprep.subr.bf16.mxu0 0
        %216 = vmatpush1.bf16.msra.mxu0 0
        %217 = vmatprep.subr.bf16.mxu0 0
        %218 = vmatpush1.bf16.msra.mxu0 0
        %219 = vmatprep.subr.bf16.mxu0 0
        %220 = vmatpush1.bf16.msra.mxu0 0
        %221 = vmatprep.subr.bf16.mxu0 0
        %222 = vmatpush1.bf16.msra.mxu0 0
        %223 = vmatprep.subr.bf16.mxu0 0
        %224 = vmatpush1.bf16.msra.mxu0 0
        %225 = vmatprep.subr.bf16.mxu0 0
        %226 = vmatpush1.bf16.msra.mxu0 0
        %227 = vmatprep.subr.bf16.mxu0 0
        %228 = vmatpush1.bf16.msra.mxu0 0
        %229 = vmatprep.subr.bf16.mxu0 0
        %230 = vmatpush1.bf16.msra.mxu0 0
        %231 = vmatprep.subr.bf16.mxu0 0
        %232 = vmatpush1.bf16.msra.mxu0 0
        %233 = vmatprep.mubr.bf16.mxu0 0
        %234 = vmatmul.mubr.bf16.gmra.mrb[0].mxu0 %v196
        %v235 = vpop.f32.mrb[0].mxu0
        %v236 = vadd.f32 %v186, %v235
        %v237 = vpop.f32.mrb[0].mxu0
        %v238 = vpop.f32.mrb[0].mxu0
        %v239 = vadd.f32 %v186, %v238
        %v240 = vpop.f32.mrb[0].mxu0
        %241 = vmatprep.mubr.bf16.mxu0 0
        %242 = vmatmul.mubr.bf16.gmra.mrb[0].mxu0 %v199
        %v243 = vpop.f32.mrb[0].mxu0
        %v244 = vadd.f32 %v186, %v243
        %v245 = vpop.f32.mrb[0].mxu0
        %v246 = vpop.f32.mrb[0].mxu0
        %v247 = vadd.f32 %v186, %v246
        %v248 = vpop.f32.mrb[0].mxu0
        %249 = vdwg.mxu0
        %250 = vst [vmem:[%s164] sm:$0xff] %v236
        %251 = vst [vmem:[%s164 + $0x8] sm:$0xff] %v239
        %252 = vst [vmem:[%s164 + $0x10] sm:$0xff] %v244
        %253 = vst [vmem:[%s164 + $0x18] sm:$0xff] %v247
        %s254 = sand.u32 %s93, 1
        %s255 = scalar_lea.sflag [#allocation3], %s254
        %s256 = sand.u32 %s93, 1
        %s257 = smul.addr %s256, 32
        %s258 = scalar_lea.vmem [#allocation2], %s257
        // Predicated region
        $region33: #{tpu_custom_call.1} parent=31 // pred_check
          %p259 = pneg %p103
        $region34: #{tpu_custom_call.1} parent=31 // pred_check_branch
          %261 = sbr.rel (%p259) target = $region36
        $region35: #{tpu_custom_call.1} parent=31 // pred_region
          %s262 = smul.u32 4, %s17
          %s264 = ssub.s32 512, 512
          %265 = vsyncadd %s255, %s264
          %s266 = smul.addr %s262, 128
          %s267 = scalar_lea.hbm %s3, %s266
          %s268 = sshll.u32 %s258, 4
          %s269 = int_to_ptr.vmem [resolvable:$true] %s268
          %274 = dma.vmem_to_hbm [thread:$0]  %s269, 512, %s267, %s255, 128, 128, 8
        $region36: #{tpu_custom_call.1} parent=31 // pred_fallthru
          _
      $region32: #{tpu_custom_call.1} parent=5 // pred_fallthru
        _
      %p275 = scmp.le.s32.totalorder 2, %s12
      // Predicated region
      $region37: #{tpu_custom_call.1} parent=5 // pred_check
        %p276 = pneg %p275
      $region38: #{tpu_custom_call.1} parent=5 // pred_check_branch
        %278 = sbr.rel (%p276) target = $region40
      $region39: #{tpu_custom_call.1} parent=5 // pred_region
        %s279 = ssub.s32 %s12, 2
        // Predicated region
        $region41: #{tpu_custom_call.1} parent=39 // pred_check
          %p280 = pneg %p109
        $region42: #{tpu_custom_call.1} parent=39 // pred_check_branch
          %282 = sbr.rel (%p280) target = $region44
        $region43: #{tpu_custom_call.1} parent=39 // pred_region
          %s283 = sand.u32 %s94, 1
          %s284 = scalar_lea.sflag [#allocation3], %s283
          %s285 = sand.u32 %s94, 1
          %s286 = smul.addr %s285, 32
          %s287 = scalar_lea.vmem [#allocation2], %s286
          %288 = dma.done %s284, 512
        $region44: #{tpu_custom_call.1} parent=39 // pred_fallthru
          _
      $region40: #{tpu_custom_call.1} parent=5 // pred_fallthru
        _
    $region6: #{tpu_custom_call.1} parent=1 // loop_footer
      %s16 = sadd.s32 1, %s12
    $region7: #{tpu_custom_call.1} parent=1 // loop_footer_branch
      %11 = sbr.rel target = $region3
    $region8: #{tpu_custom_call.1} parent=1 // loop_exit
      _
    %289 = vsyncpa [#allocation3], 1
    %s290 = scalar_lea.sflag [#allocation3], 1
    %291 = vsyncpa %s290, 1

// kernel: tpu_custom_call.1
$region0: #{tpu_custom_call.1}
  #allocation0 [shape = 'u32[]', space=smem, size = 0x4, offset = 0x4, fixed_abs, tag = 'smem constant byte address 0x4 - core index']
  #allocation1 [shape = 'u32[144,128]{1,0:T(1,128)}', space=vmem, size = 0x12000, scoped, tag = 'internal scratch']
  %s0 = inlined_call_operand.vmem [shape: f32[128,16], index: 0, kind: input, shape index: {}]
  %s1 = inlined_call_operand.vmem [shape: bf16[16,128], index: 1, kind: input, shape index: {}]
  %s2 = inlined_call_operand.vmem [shape: f32[1,128], index: 2, kind: input, shape index: {}]
  %s3 = inlined_call_operand.hbm [shape: f32[128,128], index: 3, kind: output, shape index: {}]
  %s4 = sld [smem:[#allocation0]]
  $region45: #{tpu_custom_call.1} parent=0
    _
  %s6 = ssub.s32 1, %s4
  %s7 = scalar_select 0, %s6, %s4
  $region1: #{tpu_custom_call.1} parent=0
    #allocation2 [shape = 'u8[32768]{0}', space=vmem, size = 0x8000, scoped, tag = 'output window, operand 0']
    #allocation3 [shape = 's32[2]{0}', space=sflag, size = 0x8, scoped, tag = 'scoped memory for tpu_custom_call.1']
    %8 = vsyncpa [#allocation3], 0
    %s9 = scalar_lea.sflag [#allocation3], 1
    %10 = vsyncpa %s9, 0
    loop: start=0, step=1, limit=6
    $region2: #{tpu_custom_call.1} parent=1 // loop_pre_header
      _
    $region3: #{tpu_custom_call.1} parent=1 // loop_header
      %s12 = sphi 0, %s16
      %p13 = scmp.ge.s32.totalorder %s12, 6
      %s22 = sphi 0, %s24
      %s25 = sphi 0, %s22
      %s26 = sphi 0, %s25
      %s42 = sphi 0, %s26
      %s46 = sphi 0, %s46
      %s48 = sphi 0, %s46
      %s49 = sphi 0, %s48
      %s63 = sphi 0, %s49
      %s67 = sphi 0, %s67
      %s69 = sphi 0, %s67
      %s70 = sphi 0, %s69
      %s84 = sphi 0, %s70
      %s90 = sphi 0, %s92
      %s93 = sphi 0, %s90
      %s94 = sphi 0, %s93
      %s110 = sphi 0, %s94
    $region4: #{tpu_custom_call.1} parent=1 // loop_header_branch
      %15 = sbr.rel (%p13) target = $region8
    $region5: #{tpu_custom_call.1} parent=1 // loop_body
      %s17 = ssub.s32 %s12, 1
      %s18 = ssub.s32 %s12, 2
      %s19 = sadd.s32 %s12, 1
      %s20 = ssub.s32 %s12, %s19
      %p21 = scmp.eq.s32.totalorder %s20, 0
      %s23 = sadd.s32 %s22, 1
      %s24 = scalar_select %p21, %s22, %s23
      %p27 = pneg %p21
      %p28 = scmp.eq.s32.totalorder %s12, 3
      %p29 = por %p27, %p28
      %p30 = scmp.ne.s32.totalorder %s22, %s25
      %p31 = scmp.eq.s32.totalorder %s12, 0
      %p32 = por %p30, %p31
      %p33 = scmp.ne.s32.totalorder %s22, %s25
      %p34 = scmp.eq.s32.totalorder %s17, 3
      %p35 = por %p33, %p34
      %p36 = scmp.ne.s32.totalorder %s25, %s26
      %p37 = scmp.eq.s32.totalorder %s17, 0
      %p38 = por %p36, %p37
      %p39 = scmp.ne.s32.totalorder %s25, %s26
      %p40 = scmp.eq.s32.totalorder %s18, 3
      %p41 = por %p39, %p40
      %p43 = scmp.ne.s32.totalorder %s26, %s42
      %p44 = scmp.eq.s32.totalorder %s18, 0
      %p45 = por %p43, %p44
      %s47 = sadd.s32 %s46, 1
      %p50 = scmp.eq.s32.totalorder %s12, 3
      %p51 = scmp.ne.s32.totalorder %s46, %s48
      %p52 = scmp.eq.s32.totalorder %s12, 0
      %p53 = por %p51, %p52
      %p54 = scmp.ne.s32.totalorder %s46, %s48
      %p55 = scmp.eq.s32.totalorder %s17, 3
      %p56 = por %p54, %p55
      %p57 = scmp.ne.s32.totalorder %s48, %s49
      %p58 = scmp.eq.s32.totalorder %s17, 0
      %p59 = por %p57, %p58
      %p60 = scmp.ne.s32.totalorder %s48, %s49
      %p61 = scmp.eq.s32.totalorder %s18, 3
      %p62 = por %p60, %p61
      %p64 = scmp.ne.s32.totalorder %s49, %s63
      %p65 = scmp.eq.s32.totalorder %s18, 0
      %p66 = por %p64, %p65
      %s68 = sadd.s32 %s67, 1
      %p71 = scmp.eq.s32.totalorder %s12, 3
      %p72 = scmp.ne.s32.totalorder %s67, %s69
      %p73 = scmp.eq.s32.totalorder %s12, 0
      %p74 = por %p72, %p73
      %p75 = scmp.ne.s32.totalorder %s67, %s69
      %p76 = scmp.eq.s32.totalorder %s17, 3
      %p77 = por %p75, %p76
      %p78 = scmp.ne.s32.totalorder %s69, %s70
      %p79 = scmp.eq.s32.totalorder %s17, 0
      %p80 = por %p78, %p79
      %p81 = scmp.ne.s32.totalorder %s69, %s70
      %p82 = scmp.eq.s32.totalorder %s18, 3
      %p83 = por %p81, %p82
      %p85 = scmp.ne.s32.totalorder %s70, %s84
      %p86 = scmp.eq.s32.totalorder %s18, 0
      %p87 = por %p85, %p86
      %s88 = ssub.s32 %s12, %s19
      %p89 = scmp.eq.s32.totalorder %s88, 0
      %s91 = sadd.s32 %s90, 1
      %s92 = scalar_select %p89, %s90, %s91
      %p95 = pneg %p89
      %p96 = scmp.eq.s32.totalorder %s12, 3
      %p97 = por %p95, %p96
      %p98 = scmp.ne.s32.totalorder %s90, %s93
      %p99 = scmp.eq.s32.totalorder %s12, 0
      %p100 = por %p98, %p99
      %p101 = scmp.ne.s32.totalorder %s90, %s93
      %p102 = scmp.eq.s32.totalorder %s17, 3
      %p103 = por %p101, %p102
      %p104 = scmp.ne.s32.totalorder %s93, %s94
      %p105 = scmp.eq.s32.totalorder %s17, 0
      %p106 = por %p104, %p105
      %p107 = scmp.ne.s32.totalorder %s93, %s94
      %p108 = scmp.eq.s32.totalorder %s18, 3
      %p109 = por %p107, %p108
      %p111 = scmp.ne.s32.totalorder %s94, %s110
      %p112 = scmp.eq.s32.totalorder %s18, 0
      %p113 = por %p111, %p112
      %p114 = scmp.le.s32.totalorder 1, %s12
      %p115 = scmp.lt.s32.totalorder %s12, 5
      %p116 = pnand %p114, %p115
      %p117 = pneg %p116
      // Predicated region
      $region9: #{tpu_custom_call.1} parent=5 // pred_check
        _
      $region10: #{tpu_custom_call.1} parent=5 // pred_check_branch
        %119 = sbr.rel (%p116) target = $region12
      $region11: #{tpu_custom_call.1} parent=5 // pred_region
        %s120 = ssub.s32 %s12, 1
        // Predicated region
        $region13: #{tpu_custom_call.1} parent=11 // pred_check
          %p121 = pneg %p59
        $region14: #{tpu_custom_call.1} parent=11 // pred_check_branch
          %123 = sbr.rel (%p121) target = $region16
        $region15: #{tpu_custom_call.1} parent=11 // pred_region
          _
        $region16: #{tpu_custom_call.1} parent=11 // pred_fallthru
          _
        // Predicated region
        $region17: #{tpu_custom_call.1} parent=11 // pred_check
          %p124 = pneg %p80
        $region18: #{tpu_custom_call.1} parent=11 // pred_check_branch
          %126 = sbr.rel (%p124) target = $region20
        $region19: #{tpu_custom_call.1} parent=11 // pred_region
          _
        $region20: #{tpu_custom_call.1} parent=11 // pred_fallthru
          _
      $region12: #{tpu_custom_call.1} parent=5 // pred_fallthru
        _
      %p127 = scmp.lt.s32.totalorder %s12, 4
      // Predicated region
      $region21: #{tpu_custom_call.1} parent=5 // pred_check
        %p128 = pneg %p127
      $region22: #{tpu_custom_call.1} parent=5 // pred_check_branch
        %130 = sbr.rel (%p128) target = $region24
      $region23: #{tpu_custom_call.1} parent=5 // pred_region
        // Predicated region
        $region25: #{tpu_custom_call.1} parent=23 // pred_check
          %p131 = pneg %p32
        $region26: #{tpu_custom_call.1} parent=23 // pred_check_branch
          %133 = sbr.rel (%p131) target = $region28
        $region27: #{tpu_custom_call.1} parent=23 // pred_region
          %s134 = smul.u32 4, %s12
          %p135 = scmp.lt.s32.totalorder %s134, 15
          %s136 = scalar_select %p135, %s134, 15
          %s137 = smul.addr %s136, 8
          %s138 = scalar_lea.vmem %s0, %s137
          %s139 = smul.u32 4, %s12
        $region28: #{tpu_custom_call.1} parent=23 // pred_fallthru
          _
      $region24: #{tpu_custom_call.1} parent=5 // pred_fallthru
        _
      %p140 = scmp.le.s32.totalorder 1, %s12
      %p141 = scmp.lt.s32.totalorder %s12, 5
      %p142 = pnand %p140, %p141
      %p143 = pneg %p142
      // Predicated region
      $region29: #{tpu_custom_call.1} parent=5 // pred_check
        _
      $region30: #{tpu_custom_call.1} parent=5 // pred_check_branch
        %145 = sbr.rel (%p142) target = $region32
      $region31: #{tpu_custom_call.1} parent=5 // pred_region
        %s146 = ssub.s32 %s12, 1
        %s147 = smul.u32 4, %s17
        %p148 = scmp.lt.s32.totalorder %s147, 15
        %s149 = scalar_select %p148, %s147, 15
        %s150 = smul.addr %s149, 8
        %s151 = scalar_lea.vmem %s0, %s150
        %p152 = pneg %p38
        %p153 = pneg %p35
        %p154 = pneg %p59
        %p155 = pneg %p56
        %p156 = pneg %p80
        %p157 = pneg %p77
        %p158 = pneg %p106
        %p159 = pneg %p103
        %s160 = sand.u32 %s93, 1
        %s161 = scalar_lea.sflag [#allocation3], %s160
        %s162 = sand.u32 %s93, 1
        %s163 = smul.addr %s162, 32
        %s164 = scalar_lea.vmem [#allocation2], %s163
        %s165 = smul.u32 4, %s17
        %p166 = scmp.lt.s32.totalorder %s165, 15
        %s167 = scalar_select %p166, %s165, 15
        %s168 = smul.addr %s167, 8
        %s169 = scalar_lea.vmem %s0, %s168
        %s170 = smul.u32 4, %s17
        %s171 = smul.u32 4, %s17
        %v173 = vld [vmem:[%s169] sm:$0xff]
        %v174 = vld [vmem:[%s169 + $0x8] sm:$0xff]
        %v175 = vld [vmem:[%s169 + $0x10] sm:$0xff]
        %v176 = vld [vmem:[%s169 + $0x18] sm:$0xff]
        %v177 = vpack.c.bf16 %v174, %v173
        %v178 = vpack.c.bf16 %v176, %v175
        %v179 = vld [vmem:[%s1] sm:$0xf]
        %v180 = vld [vmem:[%s1 + $0x4] sm:$0xf]
        %v181 = vld [vmem:[%s2] sm:$0x1]
        %v183 = vlaneseq
        %v184 = vshrl.u32 %v183, 7
        %v185 = vsub.s32 0, %v184
        %v186 = vrot.slane %v181, %v185
        %v190 = vunpack.c.l.b16 %v179
        %v191 = vunpack.c.l.b16 %v180
        %v192 = vpack.c.b16 %v191, %v190
        %vm194 = vcmask 130048
        %v196 = vsel %vm194, %v177, 0
        %v199 = vsel %vm194, %v178, 0
        %201 = vmatprep.subr.bf16.mxu0 0
        %202 = vmatpush1.bf16.msra.mxu0 %v192
        %203 = vmatprep.subr.bf16.mxu0 0
        %204 = vmatpush1.bf16.msra.mxu0 0
        %205 = vmatprep.subr.bf16.mxu0 0
        %206 = vmatpush1.bf16.msra.mxu0 0
        %207 = vmatprep.subr.bf16.mxu0 0
        %208 = vmatpush1.bf16.msra.mxu0 0
        %209 = vmatprep.subr.bf16.mxu0 0
        %210 = vmatpush1.bf16.msra.mxu0 0
        %211 = vmatprep.subr.bf16.mxu0 0
        %212 = vmatpush1.bf16.msra.mxu0 0
        %213 = vmatprep.subr.bf16.mxu0 0
        %214 = vmatpush1.bf16.msra.mxu0 0
        %215 = vmatprep.subr.bf16.mxu0 0
        %216 = vmatpush1.bf16.msra.mxu0 0
        %217 = vmatprep.subr.bf16.mxu0 0
        %218 = vmatpush1.bf16.msra.mxu0 0
        %219 = vmatprep.subr.bf16.mxu0 0
        %220 = vmatpush1.bf16.msra.mxu0 0
        %221 = vmatprep.subr.bf16.mxu0 0
        %222 = vmatpush1.bf16.msra.mxu0 0
        %223 = vmatprep.subr.bf16.mxu0 0
        %224 = vmatpush1.bf16.msra.mxu0 0
        %225 = vmatprep.subr.bf16.mxu0 0
        %226 = vmatpush1.bf16.msra.mxu0 0
        %227 = vmatprep.subr.bf16.mxu0 0
        %228 = vmatpush1.bf16.msra.mxu0 0
        %229 = vmatprep.subr.bf16.mxu0 0
        %230 = vmatpush1.bf16.msra.mxu0 0
        %231 = vmatprep.subr.bf16.mxu0 0
        %232 = vmatpush1.bf16.msra.mxu0 0
        %233 = vmatprep.mubr.bf16.mxu0 0
        %234 = vmatmul.mubr.bf16.gmra.mrb[0].mxu0 %v196
        %v235 = vpop.f32.mrb[0].mxu0
        %v236 = vadd.f32 %v186, %v235
        %v237 = vpop.f32.mrb[0].mxu0
        %v238 = vpop.f32.mrb[0].mxu0
        %v239 = vadd.f32 %v186, %v238
        %v240 = vpop.f32.mrb[0].mxu0
        %241 = vmatprep.mubr.bf16.mxu0 0
        %242 = vmatmul.mubr.bf16.gmra.mrb[0].mxu0 %v199
        %v243 = vpop.f32.mrb[0].mxu0
        %v244 = vadd.f32 %v186, %v243
        %v245 = vpop.f32.mrb[0].mxu0
        %v246 = vpop.f32.mrb[0].mxu0
        %v247 = vadd.f32 %v186, %v246
        %v248 = vpop.f32.mrb[0].mxu0
        %249 = vdwg.mxu0
        %250 = vst [vmem:[%s164] sm:$0xff] %v236
        %251 = vst [vmem:[%s164 + $0x8] sm:$0xff] %v239
        %252 = vst [vmem:[%s164 + $0x10] sm:$0xff] %v244
        %253 = vst [vmem:[%s164 + $0x18] sm:$0xff] %v247
        %s254 = sand.u32 %s93, 1
        %s255 = scalar_lea.sflag [#allocation3], %s254
        %s256 = sand.u32 %s93, 1
        %s257 = smul.addr %s256, 32
        %s258 = scalar_lea.vmem [#allocation2], %s257
        // Predicated region
        $region33: #{tpu_custom_call.1} parent=31 // pred_check
          %p259 = pneg %p103
        $region34: #{tpu_custom_call.1} parent=31 // pred_check_branch
          %261 = sbr.rel (%p259) target = $region36
        $region35: #{tpu_custom_call.1} parent=31 // pred_region
          %s262 = smul.u32 4, %s17
          %s264 = ssub.s32 512, 512
          %265 = vsyncadd %s255, %s264
          %s266 = smul.addr %s262, 128
          %s267 = scalar_lea.hbm %s3, %s266
          %s268 = sshll.u32 %s258, 4
          %s269 = int_to_ptr.vmem [resolvable:$true] %s268
          %274 = dma.vmem_to_hbm [thread:$0]  %s269, 512, %s267, %s255, 128, 128, 8
        $region36: #{tpu_custom_call.1} parent=31 // pred_fallthru
          _
      $region32: #{tpu_custom_call.1} parent=5 // pred_fallthru
        _
      %p275 = scmp.le.s32.totalorder 2, %s12
      // Predicated region
      $region37: #{tpu_custom_call.1} parent=5 // pred_check
        %p276 = pneg %p275
      $region38: #{tpu_custom_call.1} parent=5 // pred_check_branch
        %278 = sbr.rel (%p276) target = $region40
      $region39: #{tpu_custom_call.1} parent=5 // pred_region
        %s279 = ssub.s32 %s12, 2
        // Predicated region
        $region41: #{tpu_custom_call.1} parent=39 // pred_check
          %p280 = pneg %p109
        $region42: #{tpu_custom_call.1} parent=39 // pred_check_branch
          %282 = sbr.rel (%p280) target = $region44
        $region43: #{tpu_custom_call.1} parent=39 // pred_region
          %s283 = sand.u32 %s94, 1
          %s284 = scalar_lea.sflag [#allocation3], %s283
          %s285 = sand.u32 %s94, 1
          %s286 = smul.addr %s285, 32
          %s287 = scalar_lea.vmem [#allocation2], %s286
          %288 = dma.done %s284, 512
        $region44: #{tpu_custom_call.1} parent=39 // pred_fallthru
          _
      $region40: #{tpu_custom_call.1} parent=5 // pred_fallthru
        _
    $region6: #{tpu_custom_call.1} parent=1 // loop_footer
      %s16 = sadd.s32 1, %s12
    $region7: #{tpu_custom_call.1} parent=1 // loop_footer_branch
      %11 = sbr.rel target = $region3
    $region8: #{tpu_custom_call.1} parent=1 // loop_exit
      _
    %289 = vsyncpa [#allocation3], 1
    %s290 = scalar_lea.sflag [#allocation3], 1
    %291 = vsyncpa %s290, 1

</llo_original>
